<compile_context>
chip_gen: v7x
topology: tpu7x:2x2x1
jax: 0.10.0
libtpu: 0.0.40
codegen_flags: <defaults>
</compile_context>

<pallas_src>
import jax
import jax.numpy as jnp
from jax.experimental import pallas as pl
from jax.experimental.pallas import tpu as pltpu

_LANE = 128


def _poly_kernel(x_ref, o_ref):
    x = x_ref[...]
    if jnp.issubdtype(x.dtype, jnp.floating) and jnp.dtype(x.dtype).itemsize < 4:
        # Compute narrow floats in f32; cast back on store (HBM-bound => free).
        xf = x.astype(jnp.float32)
        o_ref[...] = ((xf + 3.0) * xf - 1.0).astype(o_ref.dtype)
    else:
        three = jnp.asarray(3, dtype=x.dtype)
        one = jnp.asarray(1, dtype=x.dtype)
        # Horner: x**2 + 3*x - 1 == (x + 3) * x - 1
        o_ref[...] = (x + three) * x - one


def _poly_jnp(x):
    """Plain-jnp reference path (tiny tensors, empty tensors, ragged tail)."""
    if jnp.issubdtype(x.dtype, jnp.floating) and jnp.dtype(x.dtype).itemsize < 4:
        xf = x.astype(jnp.float32)
        return ((xf + 3.0) * xf - 1.0).astype(x.dtype)
    three = jnp.asarray(3, dtype=x.dtype)
    one = jnp.asarray(1, dtype=x.dtype)
    return (x + three) * x - one


def _num_tensorcores():
    """2 TensorCores per chip on v7x; 1 on v5e/v6e. Perf-only heuristic."""
    try:
        kind = jax.devices()[0].device_kind.lower()
    except Exception:  # pragma: no cover - defensive, perf-only
        return 1
    return 2 if "v7" in kind else 1


def _choose_block_rows(rows, sub, itemsize, num_tc):
    """Pick a sublane-aligned block height for the (rows, 128) slab."""
    target_bytes = 2 * 1024 * 1024  # per operand per grid step
    max_block = max(sub, (target_bytes // (_LANE * itemsize)) // sub * sub)
    steps = -(-rows // max_block)  # ceil
    if num_tc > 1 and steps < 8:
        # Round the step count up to a multiple of the TC count so the
        # "parallel" grid axis splits evenly across cores, provided each step
        # still gets at least one sublane-granule of rows.
        balanced = -(-steps // num_tc) * num_tc
        if rows >= balanced * sub:
            steps = balanced
    block_rows = -(-rows // steps)            # ceil(rows / steps)
    block_rows = -(-block_rows // sub) * sub  # round up to sublane granule
    if block_rows >= rows:
        block_rows = rows                     # single full-extent block (legal)
    return block_rows


def _poly_pallas_2d(x2d, block_rows):
    rows, lane = x2d.shape
    grid = (pl.cdiv(rows, block_rows),)
    return pl.pallas_call(
        _poly_kernel,
        out_shape=jax.ShapeDtypeStruct((rows, lane), x2d.dtype),
        grid_spec=pltpu.PrefetchScalarGridSpec(
            num_scalar_prefetch=0,
            grid=grid,
            in_specs=[pl.BlockSpec((block_rows, lane), lambda i: (i, 0))],
            out_specs=pl.BlockSpec((block_rows, lane), lambda i: (i, 0)),
        ),
        compiler_params=pltpu.CompilerParams(
            dimension_semantics=("parallel",),
            vmem_limit_bytes=32 * 1024 * 1024,
        ),
    )(x2d)


def pt_module_forward(x, *, min_pallas_elems=1024):
    """Computes x**2 + 3*x - 1 elementwise via a Pallas TPU kernel."""
    orig_shape = x.shape
    n = x.size

    # Empty / tiny inputs: launch overhead dominates -> plain (fusable) XLA.
    # (Production threshold could be higher, e.g. ~64K elements.)
    if n == 0 or n < min_pallas_elems:
        return _poly_jnp(x)

    itemsize = jnp.dtype(x.dtype).itemsize
    # Minimum sublane granularity per dtype width (f32:8, bf16:16, i8/fp8:32).
    sub = {4: 8, 2: 16, 1: 32}.get(itemsize, 8)
    num_tc = _num_tensorcores()

    x_flat = jnp.ravel(x)
    n_main = (n // _LANE) * _LANE   # 128-divisible prefix (>= 1024 elements here)
    tail = n - n_main
    rows = n_main // _LANE

    block_rows = _choose_block_rows(rows, sub, itemsize, num_tc)

    if tail == 0:
        # Fast path: free reshapes, no extra HBM passes.
        out2d = _poly_pallas_2d(x_flat.reshape(rows, _LANE), block_rows)
        return out2d.reshape(orig_shape)

    # Ragged path: kernel on the 128-divisible prefix, <=127-element tail in
    # plain jnp, then stitch together.
    out_main = _poly_pallas_2d(x_flat[:n_main].reshape(rows, _LANE), block_rows)
    out_tail = _poly_jnp(x_flat[n_main:])
    out_flat = jnp.concatenate([out_main.reshape(-1), out_tail])
    return out_flat.reshape(orig_shape)


if __name__ == "__main__":
    key = jax.random.PRNGKey(0)

    # Primary shape consistent with the module (batch of 2 stacked results).
    x = jax.random.normal(key, (2, 4, 16, 16), dtype=jnp.float32)
    y = jax.block_until_ready(pt_module_forward(x))
    y_ref = x ** 2 + 3.0 * x - 1.0
    assert y.shape == x.shape
    assert y.dtype == x.dtype
    assert jnp.allclose(y, y_ref, atol=1e-5, rtol=1e-5)

    # Ragged size (not divisible by 128): exercises prefix-kernel + jnp tail.
    x2 = jax.random.normal(jax.random.PRNGKey(1), (1000, 33), dtype=jnp.float32)
    y2 = jax.block_until_ready(pt_module_forward(x2))
    y2_ref = x2 ** 2 + 3.0 * x2 - 1.0
    assert jnp.allclose(y2, y2_ref, atol=1e-5, rtol=1e-5)

    print("KERNEL_OK")
</pallas_src>

<mosaic_0001>
module attributes {stable_mosaic.version = 11 : i64} {
  func.func @_poly_kernel(%arg0: i32, %arg1: memref<16x128xf32, #tpu.memory_space<vmem>>, %arg2: memref<16x128xf32, #tpu.memory_space<vmem>>) attributes {dimension_semantics = [#tpu.dimension_semantics<parallel>], iteration_bounds = array<i64: 1>, scalar_prefetch = 0 : i64, scratch_operands = 0 : i64, tpu.core_type = #tpu.core_type<tc>, window_params = [{transform_indices = @transform_0, window_bounds = array<i64: 16, 128>}, {transform_indices = @transform_1, window_bounds = array<i64: 16, 128>}]} {
    %c0 = arith.constant 0 : index
    %c0_0 = arith.constant 0 : index
    %0 = vector.load %arg1[%c0, %c0_0] : memref<16x128xf32, #tpu.memory_space<vmem>>, vector<16x128xf32>
    %cst = arith.constant 3.000000e+00 : f32
    %1 = vector.broadcast %cst : f32 to vector<16x128xf32>
    %2 = arith.addf %0, %1 : vector<16x128xf32>
    %3 = arith.mulf %2, %0 : vector<16x128xf32>
    %cst_1 = arith.constant 1.000000e+00 : f32
    %4 = vector.broadcast %cst_1 : f32 to vector<16x128xf32>
    %5 = arith.subf %3, %4 : vector<16x128xf32>
    %c0_2 = arith.constant 0 : index
    %c0_3 = arith.constant 0 : index
    %6 = vector.load %arg2[%c0_2, %c0_3] : memref<16x128xf32, #tpu.memory_space<vmem>>, vector<16x128xf32>
    tpu.vector_store %arg2[%c0_2, %c0_3], %5 {strides = array<i32>} : memref<16x128xf32, #tpu.memory_space<vmem>>, vector<16x128xf32>,
    return
  }
  func.func @transform_0(%arg0: i32) -> (i32, i32) {
    %c0_i32 = arith.constant 0 : i32
    %c0_i32_0 = arith.constant 0 : i32
    return %arg0, %c0_i32 : i32, i32
  }
  func.func @transform_1(%arg0: i32) -> (i32, i32) {
    %c0_i32 = arith.constant 0 : i32
    %c0_i32_0 = arith.constant 0 : i32
    return %arg0, %c0_i32 : i32, i32
  }
}

</mosaic_0001>

<llo_original>
// kernel: tpu_custom_call.1
$region0: #{tpu_custom_call.1}
  #allocation0 [shape = 'u32[]', space=smem, size = 0x4, offset = 0x4, fixed_abs, tag = 'smem constant byte address 0x4 - core index']
  #allocation1 [shape = 'u32[144,128]{1,0:T(1,128)}', space=vmem, size = 0x12000, scoped, tag = 'internal scratch']
  %s0 = inlined_call_operand.hbm [shape: f32[16,128], index: 0, kind: input, shape index: {}]
  %s1 = inlined_call_operand.hbm [shape: f32[16,128], index: 1, kind: output, shape index: {}]
  %s2 = sld [smem:[#allocation0]]
  $region18: #{tpu_custom_call.1} parent=0
    _
  %s4 = ssub.s32 1, %s2
  %s5 = scalar_select 0, %s4, %s2
  $region1: #{tpu_custom_call.1} parent=0
    #allocation2 [shape = 'u8[8192]{0}', space=vmem, size = 0x2000, scoped, tag = 'input window, operand 0, single buffered']
    #allocation3 [shape = 's32[1]{0}', space=sflag, size = 0x4, scoped, tag = 'scoped memory for tpu_custom_call.1']
    #allocation4 [shape = 's32[1]{0}', space=sflag, size = 0x4, scoped, tag = 'scoped memory for tpu_custom_call.1']
    #allocation5 [shape = 'u8[8192]{0}', space=vmem, size = 0x2000, scoped, tag = 'output window, operand 0, single buffered']
    %6 = vsyncpa [#allocation3], 0
    %7 = vsyncpa [#allocation4], 0
    // Predicated region
    $region2: #{tpu_custom_call.1} parent=1 // pred_check
      _
    $region3: #{tpu_custom_call.1} parent=1 // pred_check_branch
      %9 = sbr.rel (0) target = $region5
    $region4: #{tpu_custom_call.1} parent=1 // pred_region
      %s11 = ssub.s32 256, 256
      %12 = vsyncadd [#allocation3], %s11
      %s13 = sshll.u32 [#allocation2], 4
      %s14 = int_to_ptr.vmem [resolvable:$true] %s13
      %19 = dma.hbm_to_vmem [thread:$0]  %s0, 256, %s14, [#allocation3], 128, 128, 8
    $region5: #{tpu_custom_call.1} parent=1 // pred_fallthru
      _
    // Predicated region
    $region6: #{tpu_custom_call.1} parent=1 // pred_check
      _
    $region7: #{tpu_custom_call.1} parent=1 // pred_check_branch
      %21 = sbr.rel (0) target = $region9
    $region8: #{tpu_custom_call.1} parent=1 // pred_region
      %22 = dma.done [#allocation3], 256
    $region9: #{tpu_custom_call.1} parent=1 // pred_fallthru
      _
    %v23 = vld [vmem:[#allocation2] sm:$0xff]
    %v24 = vld [vmem:[#allocation2 + $0x8] sm:$0xff]
    %v25 = vadd.f32 %v23, 3.0
    %v26 = vadd.f32 %v24, 3.0
    %v27 = vmul.f32 %v25, %v23
    %v28 = vmul.f32 %v26, %v24
    %v29 = vsub.f32 %v27, 1.0
    %v30 = vsub.f32 %v28, 1.0
    %31 = vst [vmem:[#allocation5] sm:$0xff] %v29
    %32 = vst [vmem:[#allocation5 + $0x8] sm:$0xff] %v30
    // Predicated region
    $region10: #{tpu_custom_call.1} parent=1 // pred_check
      _
    $region11: #{tpu_custom_call.1} parent=1 // pred_check_branch
      %34 = sbr.rel (0) target = $region13
    $region12: #{tpu_custom_call.1} parent=1 // pred_region
      %s36 = ssub.s32 256, 256
      %37 = vsyncadd [#allocation4], %s36
      %s38 = sshll.u32 [#allocation5], 4
      %s39 = int_to_ptr.vmem [resolvable:$true] %s38
      %44 = dma.vmem_to_hbm [thread:$0]  %s39, 256, %s1, [#allocation4], 128, 128, 8
    $region13: #{tpu_custom_call.1} parent=1 // pred_fallthru
      _
    // Predicated region
    $region14: #{tpu_custom_call.1} parent=1 // pred_check
      _
    $region15: #{tpu_custom_call.1} parent=1 // pred_check_branch
      %46 = sbr.rel (0) target = $region17
    $region16: #{tpu_custom_call.1} parent=1 // pred_region
      %47 = dma.done [#allocation4], 256
    $region17: #{tpu_custom_call.1} parent=1 // pred_fallthru
      _
    %48 = vsyncpa [#allocation3], 1
    %49 = vsyncpa [#allocation4], 1

</llo_original>
